<compile_context>
chip_gen: v7x
topology: tpu7x:2x2x1
jax: 0.10.0
libtpu: 0.0.40
codegen_flags: <defaults>
</compile_context>

<pallas_src>
import jax
import jax.numpy as jnp
from jax.experimental import pallas as pl
from jax.experimental.pallas import tpu as pltpu

AGENT_SIZE = 20
H_DIM = 128            # each of h1/h2/h3 has 128 features
IN_SIZE = H_DIM * 3    # 384
HIDDEN = 128
OUT_PAD = 128          # lane-dense padded output width (>= AGENT_SIZE)
_NEG_BIG = -1e30       # padded-logit bias -> exp() is exactly 0 in f32


def _round_up(x, m):
    return ((x + m - 1) // m) * m


def _adj_decision_kernel(h1_ref, h2_ref, h3_ref,
                         w1a_ref, w1b_ref, w1c_ref, b1_ref,
                         w2_ref, b2_ref, o_ref):
    # h1/h2/h3: [TB,128] f32, w1a/b/c: [128,128] f32, b1: [1,128] f32,
    # w2: [128,128] f32 (cols >=20 are zero), b2: [1,128] f32 (cols >=20 are -1e30),
    # o: [TB,128] int8 (0/1 mask).
    #
    # Fused concat: cat(h1,h2,h3) @ W1 == h1@W1[0:128] + h2@W1[128:256] + h3@W1[256:384]
    h = jnp.dot(h1_ref[...], w1a_ref[...], preferred_element_type=jnp.float32)
    h = h + jnp.dot(h2_ref[...], w1b_ref[...], preferred_element_type=jnp.float32)
    h = h + jnp.dot(h3_ref[...], w1c_ref[...], preferred_element_type=jnp.float32)
    h = jnp.maximum(h + b1_ref[...], 0.0)                                  # bias + ReLU

    logits = jnp.dot(h, w2_ref[...], preferred_element_type=jnp.float32) + b2_ref[...]

    # Softmax over the last dim followed by the 0/1 threshold at 0.1:
    #   p = e / sum(e);  p >= 0.1  <=>  e >= 0.1 * sum(e)   (no divide needed).
    # Padded lanes have logits ~ -1e30 -> e == 0 -> contribute nothing and never pass.
    m = jnp.max(logits, axis=-1, keepdims=True)
    e = jnp.exp(logits - m)
    s = jnp.sum(e, axis=-1, keepdims=True)
    o_ref[...] = jnp.where(e >= 0.1 * s, 1.0, 0.0).astype(o_ref.dtype)     # int8 0/1


def adj_decision_net(h1, h2, h3, params, tile_b=2048):
    """Forward pass of AdjDecisionNet via a batch-tiled Pallas TPU kernel.

    h1, h2, h3: [batch, 128] float32
    params: dict with w1 [384,128], b1 [128], w2 [128,20], b2 [20]  (weights stored [in,out])
    returns: [batch, 20] float32 of 0.0 / 1.0
    """
    batch = h1.shape[0]
    # Batch tile: multiple of 32 (int8 output min tile is (32,128)). No batch padding is
    # done; Pallas masks the ragged final block. For v7x megacore, very large batches get
    # >= 2 tiles per core automatically; sweep tile_b in {1024, 2048, 4096} if tuning.
    tb = _round_up(min(tile_b, _round_up(max(batch, 1), 32)), 32)
    grid = (pl.cdiv(batch, tb),)

    w1 = params["w1"].astype(jnp.float32)
    w1a, w1b, w1c = w1[0:H_DIM], w1[H_DIM:2 * H_DIM], w1[2 * H_DIM:3 * H_DIM]
    b1 = params["b1"].reshape(1, HIDDEN).astype(jnp.float32)

    # Pad second layer to 128 lanes (lane-dense store). Padded weight cols are 0,
    # padded bias cols are a huge negative so their softmax contribution is exactly 0.
    w2 = jnp.zeros((HIDDEN, OUT_PAD), jnp.float32).at[:, :AGENT_SIZE].set(
        params["w2"].astype(jnp.float32))
    b2 = jnp.full((1, OUT_PAD), _NEG_BIG, jnp.float32).at[:, :AGENT_SIZE].set(
        params["b2"].astype(jnp.float32))

    weight_bytes = (3 * H_DIM * HIDDEN + HIDDEN + HIDDEN * OUT_PAD + OUT_PAD) * 4
    cost = pl.CostEstimate(
        flops=2 * batch * (IN_SIZE * HIDDEN + HIDDEN * OUT_PAD),
        transcendentals=batch * OUT_PAD,
        bytes_accessed=3 * batch * H_DIM * 4 + batch * OUT_PAD * 1 + weight_bytes,
    )

    out = pl.pallas_call(
        _adj_decision_kernel,
        out_shape=jax.ShapeDtypeStruct((batch, OUT_PAD), jnp.int8),
        grid=grid,
        in_specs=[
            pl.BlockSpec((tb, H_DIM), lambda i: (i, 0)),        # h1 tile (f32, no wrapper copy)
            pl.BlockSpec((tb, H_DIM), lambda i: (i, 0)),        # h2 tile
            pl.BlockSpec((tb, H_DIM), lambda i: (i, 0)),        # h3 tile
            pl.BlockSpec((H_DIM, HIDDEN), lambda i: (0, 0)),    # w1a (VMEM-resident)
            pl.BlockSpec((H_DIM, HIDDEN), lambda i: (0, 0)),    # w1b
            pl.BlockSpec((H_DIM, HIDDEN), lambda i: (0, 0)),    # w1c
            pl.BlockSpec((1, HIDDEN), lambda i: (0, 0)),        # b1
            pl.BlockSpec((HIDDEN, OUT_PAD), lambda i: (0, 0)),  # w2 (padded)
            pl.BlockSpec((1, OUT_PAD), lambda i: (0, 0)),       # b2 (padded)
        ],
        out_specs=pl.BlockSpec((tb, OUT_PAD), lambda i: (i, 0)),
        compiler_params=pltpu.CompilerParams(
            dimension_semantics=("parallel",),                  # megacore batch split on v7x
            vmem_limit_bytes=32 * 1024 * 1024),                 # headroom for tb=4096 sweeps
        cost_estimate=cost,
    )(h1.astype(jnp.float32), h2.astype(jnp.float32), h3.astype(jnp.float32),
      w1a, w1b, w1c, b1, w2, b2)

    # Small int8 slice (4x cheaper than before) + cast back to the module's float 0/1 output.
    return out[:, :AGENT_SIZE].astype(jnp.float32)


def init_params(key):
    """Deterministic, PyTorch-Linear-style uniform init (U[-1/sqrt(fan_in), 1/sqrt(fan_in)])."""
    k1, k2, k3, k4 = jax.random.split(key, 4)
    bound1 = 1.0 / jnp.sqrt(jnp.float32(IN_SIZE))
    bound2 = 1.0 / jnp.sqrt(jnp.float32(HIDDEN))
    return {
        # stored transposed: [in, out]
        "w1": jax.random.uniform(k1, (IN_SIZE, HIDDEN), jnp.float32, -bound1, bound1),
        "b1": jax.random.uniform(k2, (HIDDEN,), jnp.float32, -bound1, bound1),
        "w2": jax.random.uniform(k3, (HIDDEN, AGENT_SIZE), jnp.float32, -bound2, bound2),
        "b2": jax.random.uniform(k4, (AGENT_SIZE,), jnp.float32, -bound2, bound2),
    }


def _reference(h1, h2, h3, params):
    """Pure-JAX, torch-faithful f32 reference. Returns (mask, probabilities)."""
    x = jnp.concatenate([h1, h2, h3], axis=-1)
    h = jnp.maximum(
        jnp.dot(x, params["w1"], precision=jax.lax.Precision.HIGHEST) + params["b1"][None, :],
        0.0)
    logits = (jnp.dot(h, params["w2"], precision=jax.lax.Precision.HIGHEST)
              + params["b2"][None, :])
    p = jax.nn.softmax(logits, axis=-1)
    return jnp.where(p >= 0.1, 1.0, 0.0), p


if __name__ == "__main__":
    key = jax.random.PRNGKey(0)
    params = init_params(jax.random.fold_in(key, 0))

    # batch=8: minimal case; batch=50: exercises the ragged (masked) edge block + tb%32 path.
    for batch in (8, 50):
        k1, k2, k3 = jax.random.split(jax.random.fold_in(key, batch), 3)
        h1 = jax.random.normal(k1, (batch, H_DIM), jnp.float32)
        h2 = jax.random.normal(k2, (batch, H_DIM), jnp.float32)
        h3 = jax.random.normal(k3, (batch, H_DIM), jnp.float32)

        out = jax.block_until_ready(adj_decision_net(h1, h2, h3, params))
        ref, p_ref = _reference(h1, h2, h3, params)

        assert out.shape == (batch, AGENT_SIZE)
        assert bool(jnp.all(jnp.logical_or(out == 0.0, out == 1.0))), "output not 0/1"
        # Exact match except (at most) entries sitting numerically on the p==0.1 boundary.
        on_boundary = jnp.abs(p_ref - 0.1) < 1e-4
        assert bool(jnp.all(jnp.logical_or(out == ref, on_boundary))), \
            "mismatch vs pure-JAX reference"

    print("KERNEL_OK")
</pallas_src>

<mosaic_0001>
module attributes {stable_mosaic.version = 11 : i64} {
  func.func @_adj_decision_kernel(%arg0: i32, %arg1: memref<32x128xf32, #tpu.memory_space<vmem>>, %arg2: memref<32x128xf32, #tpu.memory_space<vmem>>, %arg3: memref<32x128xf32, #tpu.memory_space<vmem>>, %arg4: memref<128x128xf32, #tpu.memory_space<vmem>>, %arg5: memref<128x128xf32, #tpu.memory_space<vmem>>, %arg6: memref<128x128xf32, #tpu.memory_space<vmem>>, %arg7: memref<1x128xf32, #tpu.memory_space<vmem>>, %arg8: memref<128x128xf32, #tpu.memory_space<vmem>>, %arg9: memref<1x128xf32, #tpu.memory_space<vmem>>, %arg10: memref<32x128xi8, #tpu.memory_space<vmem>>) attributes {dimension_semantics = [#tpu.dimension_semantics<parallel>], iteration_bounds = array<i64: 1>, scalar_prefetch = 0 : i64, scratch_operands = 0 : i64, tpu.core_type = #tpu.core_type<tc>, window_params = [{transform_indices = @transform_0, window_bounds = array<i64: 32, 128>}, {transform_indices = @transform_1, window_bounds = array<i64: 32, 128>}, {transform_indices = @transform_2, window_bounds = array<i64: 32, 128>}, {pipeline_mode = #tpu.pipeline_mode<synchronous>, transform_indices = @transform_3, window_bounds = array<i64: 128, 128>}, {pipeline_mode = #tpu.pipeline_mode<synchronous>, transform_indices = @transform_4, window_bounds = array<i64: 128, 128>}, {pipeline_mode = #tpu.pipeline_mode<synchronous>, transform_indices = @transform_5, window_bounds = array<i64: 128, 128>}, {pipeline_mode = #tpu.pipeline_mode<synchronous>, transform_indices = @transform_6, window_bounds = array<i64: 1, 128>}, {pipeline_mode = #tpu.pipeline_mode<synchronous>, transform_indices = @transform_7, window_bounds = array<i64: 128, 128>}, {pipeline_mode = #tpu.pipeline_mode<synchronous>, transform_indices = @transform_8, window_bounds = array<i64: 1, 128>}, {transform_indices = @transform_9, window_bounds = array<i64: 32, 128>}]} {
    %c0 = arith.constant 0 : index
    %c0_0 = arith.constant 0 : index
    %0 = vector.load %arg1[%c0, %c0_0] : memref<32x128xf32, #tpu.memory_space<vmem>>, vector<32x128xf32>
    %c0_1 = arith.constant 0 : index
    %c0_2 = arith.constant 0 : index
    %1 = vector.load %arg4[%c0_1, %c0_2] : memref<128x128xf32, #tpu.memory_space<vmem>>, vector<128x128xf32>
    %cst = arith.constant dense<0.000000e+00> : vector<32x128xf32>
    %2 = tpu.matmul %0, %1, %cst {dimension_numbers = #tpu.dot_dimension_numbers<[1], [0], [0], [1], [0, 0, 1, 1], [], []>} : vector<32x128xf32>, vector<128x128xf32>, vector<32x128xf32> -> vector<32x128xf32>
    %c0_3 = arith.constant 0 : index
    %c0_4 = arith.constant 0 : index
    %3 = vector.load %arg2[%c0_3, %c0_4] : memref<32x128xf32, #tpu.memory_space<vmem>>, vector<32x128xf32>
    %c0_5 = arith.constant 0 : index
    %c0_6 = arith.constant 0 : index
    %4 = vector.load %arg5[%c0_5, %c0_6] : memref<128x128xf32, #tpu.memory_space<vmem>>, vector<128x128xf32>
    %cst_7 = arith.constant dense<0.000000e+00> : vector<32x128xf32>
    %5 = tpu.matmul %3, %4, %cst_7 {dimension_numbers = #tpu.dot_dimension_numbers<[1], [0], [0], [1], [0, 0, 1, 1], [], []>} : vector<32x128xf32>, vector<128x128xf32>, vector<32x128xf32> -> vector<32x128xf32>
    %6 = arith.addf %2, %5 : vector<32x128xf32>
    %c0_8 = arith.constant 0 : index
    %c0_9 = arith.constant 0 : index
    %7 = vector.load %arg3[%c0_8, %c0_9] : memref<32x128xf32, #tpu.memory_space<vmem>>, vector<32x128xf32>
    %c0_10 = arith.constant 0 : index
    %c0_11 = arith.constant 0 : index
    %8 = vector.load %arg6[%c0_10, %c0_11] : memref<128x128xf32, #tpu.memory_space<vmem>>, vector<128x128xf32>
    %cst_12 = arith.constant dense<0.000000e+00> : vector<32x128xf32>
    %9 = tpu.matmul %7, %8, %cst_12 {dimension_numbers = #tpu.dot_dimension_numbers<[1], [0], [0], [1], [0, 0, 1, 1], [], []>} : vector<32x128xf32>, vector<128x128xf32>, vector<32x128xf32> -> vector<32x128xf32>
    %10 = arith.addf %6, %9 : vector<32x128xf32>
    %c0_13 = arith.constant 0 : index
    %c0_14 = arith.constant 0 : index
    %11 = vector.load %arg7[%c0_13, %c0_14] : memref<1x128xf32, #tpu.memory_space<vmem>>, vector<1x128xf32>
    %12 = vector.broadcast %11 : vector<1x128xf32> to vector<32x128xf32>
    %13 = arith.addf %10, %12 : vector<32x128xf32>
    %cst_15 = arith.constant 0.000000e+00 : f32
    %14 = vector.broadcast %cst_15 : f32 to vector<32x128xf32>
    %15 = arith.maximumf %13, %14 : vector<32x128xf32>
    %c0_16 = arith.constant 0 : index
    %c0_17 = arith.constant 0 : index
    %16 = vector.load %arg8[%c0_16, %c0_17] : memref<128x128xf32, #tpu.memory_space<vmem>>, vector<128x128xf32>
    %cst_18 = arith.constant dense<0.000000e+00> : vector<32x128xf32>
    %17 = tpu.matmul %15, %16, %cst_18 {dimension_numbers = #tpu.dot_dimension_numbers<[1], [0], [0], [1], [0, 0, 1, 1], [], []>} : vector<32x128xf32>, vector<128x128xf32>, vector<32x128xf32> -> vector<32x128xf32>
    %c0_19 = arith.constant 0 : index
    %c0_20 = arith.constant 0 : index
    %18 = vector.load %arg9[%c0_19, %c0_20] : memref<1x128xf32, #tpu.memory_space<vmem>>, vector<1x128xf32>
    %19 = vector.broadcast %18 : vector<1x128xf32> to vector<32x128xf32>
    %20 = arith.addf %17, %19 : vector<32x128xf32>
    %cst_21 = arith.constant dense<0xFF800000> : vector<32xf32>
    %21 = vector.multi_reduction <maximumf>, %20, %cst_21 [1] : vector<32x128xf32> to vector<32xf32>
    %22 = vector.shape_cast %21 : vector<32xf32> to vector<32x1xf32>
    %23 = vector.broadcast %22 : vector<32x1xf32> to vector<32x128xf32>
    %24 = arith.subf %20, %23 : vector<32x128xf32>
    %25 = math.exp %24 : vector<32x128xf32>
    %cst_22 = arith.constant dense<0.000000e+00> : vector<32xf32>
    %26 = vector.multi_reduction <add>, %25, %cst_22 [1] : vector<32x128xf32> to vector<32xf32>
    %27 = vector.shape_cast %26 : vector<32xf32> to vector<32x1xf32>
    %cst_23 = arith.constant 1.000000e-01 : f32
    %28 = vector.broadcast %cst_23 : f32 to vector<32x1xf32>
    %29 = arith.mulf %28, %27 : vector<32x1xf32>
    %30 = vector.broadcast %29 : vector<32x1xf32> to vector<32x128xf32>
    %31 = arith.cmpf oge, %25, %30 : vector<32x128xf32>
    %cst_24 = arith.constant 1.000000e+00 : f32
    %cst_25 = arith.constant 0.000000e+00 : f32
    %32 = vector.broadcast %cst_24 : f32 to vector<32x128xf32>
    %33 = vector.broadcast %cst_25 : f32 to vector<32x128xf32>
    %34 = arith.select %31, %32, %33 : vector<32x128xi1>, vector<32x128xf32>
    %35 = arith.fptosi %34 : vector<32x128xf32> to vector<32x128xi8>
    %c0_26 = arith.constant 0 : index
    %c0_27 = arith.constant 0 : index
    %36 = vector.load %arg10[%c0_26, %c0_27] : memref<32x128xi8, #tpu.memory_space<vmem>>, vector<32x128xi8>
    tpu.vector_store %arg10[%c0_26, %c0_27], %35 {strides = array<i32>} : memref<32x128xi8, #tpu.memory_space<vmem>>, vector<32x128xi8>,
    return
  }
  func.func @transform_0(%arg0: i32) -> (i32, i32) {
    %c0_i32 = arith.constant 0 : i32
    %c0_i32_0 = arith.constant 0 : i32
    return %arg0, %c0_i32 : i32, i32
  }
  func.func @transform_1(%arg0: i32) -> (i32, i32) {
    %c0_i32 = arith.constant 0 : i32
    %c0_i32_0 = arith.constant 0 : i32
    return %arg0, %c0_i32 : i32, i32
  }
  func.func @transform_2(%arg0: i32) -> (i32, i32) {
    %c0_i32 = arith.constant 0 : i32
    %c0_i32_0 = arith.constant 0 : i32
    return %arg0, %c0_i32 : i32, i32
  }
  func.func @transform_3(%arg0: i32) -> (i32, i32) {
    %c0_i32 = arith.constant 0 : i32
    %c0_i32_0 = arith.constant 0 : i32
    %c0_i32_1 = arith.constant 0 : i32
    return %c0_i32, %c0_i32_0 : i32, i32
  }
  func.func @transform_4(%arg0: i32) -> (i32, i32) {
    %c0_i32 = arith.constant 0 : i32
    %c0_i32_0 = arith.constant 0 : i32
    %c0_i32_1 = arith.constant 0 : i32
    return %c0_i32, %c0_i32_0 : i32, i32
  }
  func.func @transform_5(%arg0: i32) -> (i32, i32) {
    %c0_i32 = arith.constant 0 : i32
    %c0_i32_0 = arith.constant 0 : i32
    %c0_i32_1 = arith.constant 0 : i32
    return %c0_i32, %c0_i32_0 : i32, i32
  }
  func.func @transform_6(%arg0: i32) -> (i32, i32) {
    %c0_i32 = arith.constant 0 : i32
    %c0_i32_0 = arith.constant 0 : i32
    %c0_i32_1 = arith.constant 0 : i32
    return %c0_i32, %c0_i32_0 : i32, i32
  }
  func.func @transform_7(%arg0: i32) -> (i32, i32) {
    %c0_i32 = arith.constant 0 : i32
    %c0_i32_0 = arith.constant 0 : i32
    %c0_i32_1 = arith.constant 0 : i32
    return %c0_i32, %c0_i32_0 : i32, i32
  }
  func.func @transform_8(%arg0: i32) -> (i32, i32) {
    %c0_i32 = arith.constant 0 : i32
    %c0_i32_0 = arith.constant 0 : i32
    %c0_i32_1 = arith.constant 0 : i32
    return %c0_i32, %c0_i32_0 : i32, i32
  }
  func.func @transform_9(%arg0: i32) -> (i32, i32) {
    %c0_i32 = arith.constant 0 : i32
    %c0_i32_0 = arith.constant 0 : i32
    return %arg0, %c0_i32 : i32, i32
  }
}

</mosaic_0001>

<llo_original>
// kernel: tpu_custom_call.1
$region0: #{tpu_custom_call.1}
  #allocation0 [shape = 'u32[]', space=smem, size = 0x4, offset = 0x4, fixed_abs, tag = 'smem constant byte address 0x4 - core index']
  #allocation1 [shape = 'u32[144,128]{1,0:T(1,128)}', space=vmem, size = 0x12000, scoped, tag = 'internal scratch']
  %s0 = inlined_call_operand.hbm [shape: f32[8,128], index: 0, kind: input, shape index: {}]
  %s1 = inlined_call_operand.hbm [shape: f32[8,128], index: 1, kind: input, shape index: {}]
  %s2 = inlined_call_operand.hbm [shape: f32[8,128], index: 2, kind: input, shape index: {}]
  %s3 = inlined_call_operand.hbm [shape: f32[128,128], index: 3, kind: input, shape index: {}]
  %s4 = inlined_call_operand.hbm [shape: f32[128,128], index: 4, kind: input, shape index: {}]
  %s5 = inlined_call_operand.hbm [shape: f32[128,128], index: 5, kind: input, shape index: {}]
  %s6 = inlined_call_operand.vmem [shape: f32[1,128], index: 6, kind: input, shape index: {}]
  %s7 = inlined_call_operand.hbm [shape: f32[128,128], index: 7, kind: input, shape index: {}]
  %s8 = inlined_call_operand.vmem [shape: f32[1,128], index: 8, kind: input, shape index: {}]
  %s9 = inlined_call_operand.hbm [shape: s8[8,128], index: 9, kind: output, shape index: {}]
  %s10 = sld [smem:[#allocation0]]
  $region74: #{tpu_custom_call.1} parent=0
    _
  %s12 = ssub.s32 1, %s10
  %s13 = scalar_select 0, %s12, %s10
  $region1: #{tpu_custom_call.1} parent=0
    #allocation2 [shape = 'u8[16384]{0}', space=vmem, size = 0x4000, scoped, tag = 'input window, operand 0, single buffered']
    #allocation3 [shape = 's32[1]{0}', space=sflag, size = 0x4, scoped, tag = 'scoped memory for tpu_custom_call.1']
    #allocation4 [shape = 's32[1]{0}', space=sflag, size = 0x4, scoped, tag = 'scoped memory for tpu_custom_call.1']
    #allocation5 [shape = 'u8[16384]{0}', space=vmem, size = 0x4000, scoped, tag = 'input window, operand 1, single buffered']
    #allocation6 [shape = 's32[1]{0}', space=sflag, size = 0x4, scoped, tag = 'scoped memory for tpu_custom_call.1']
    #allocation7 [shape = 'u8[16384]{0}', space=vmem, size = 0x4000, scoped, tag = 'input window, operand 2, single buffered']
    #allocation8 [shape = 'u8[65536]{0}', space=vmem, size = 0x10000, scoped, tag = 'input window, operand 3, single buffered']
    #allocation9 [shape = 's32[1]{0}', space=sflag, size = 0x4, scoped, tag = 'scoped memory for tpu_custom_call.1']
    #allocation10 [shape = 'u8[65536]{0}', space=vmem, size = 0x10000, scoped, tag = 'input window, operand 4, single buffered']
    #allocation11 [shape = 'u8[65536]{0}', space=vmem, size = 0x10000, scoped, tag = 'input window, operand 5, single buffered']
    #allocation12 [shape = 's32[1]{0}', space=sflag, size = 0x4, scoped, tag = 'scoped memory for tpu_custom_call.1']
    #allocation13 [shape = 'u8[65536]{0}', space=vmem, size = 0x10000, scoped, tag = 'input window, operand 7, single buffered']
    #allocation14 [shape = 'u8[4096]{0}', space=vmem, size = 0x1000, scoped, tag = 'output window, operand 0, single buffered']
    %14 = vsyncpa [#allocation3], 0
    %15 = vsyncpa [#allocation6], 0
    %16 = vsyncpa [#allocation9], 0
    %17 = vsyncpa [#allocation12], 0
    %18 = vsyncpa [#allocation4], 0
    // Predicated region
    $region2: #{tpu_custom_call.1} parent=1 // pred_check
      _
    $region3: #{tpu_custom_call.1} parent=1 // pred_check_branch
      %20 = sbr.rel (0) target = $region5
    $region4: #{tpu_custom_call.1} parent=1 // pred_region
      %s22 = ssub.s32 512, 128
      %23 = vsyncadd [#allocation3], %s22
      %s24 = sshll.u32 [#allocation2], 4
      %s25 = int_to_ptr.vmem [resolvable:$true] %s24
      %30 = dma.hbm_to_vmem [thread:$0]  %s0, 128, %s25, [#allocation3], 128, 128, 8
    $region5: #{tpu_custom_call.1} parent=1 // pred_fallthru
      _
    // Predicated region
    $region6: #{tpu_custom_call.1} parent=1 // pred_check
      _
    $region7: #{tpu_custom_call.1} parent=1 // pred_check_branch
      %32 = sbr.rel (0) target = $region9
    $region8: #{tpu_custom_call.1} parent=1 // pred_region
      %s34 = ssub.s32 512, 128
      %35 = vsyncadd [#allocation6], %s34
      %s36 = sshll.u32 [#allocation5], 4
      %s37 = int_to_ptr.vmem [resolvable:$true] %s36
      %42 = dma.hbm_to_vmem [thread:$0]  %s1, 128, %s37, [#allocation6], 128, 128, 8
    $region9: #{tpu_custom_call.1} parent=1 // pred_fallthru
      _
    // Predicated region
    $region10: #{tpu_custom_call.1} parent=1 // pred_check
      _
    $region11: #{tpu_custom_call.1} parent=1 // pred_check_branch
      %44 = sbr.rel (0) target = $region13
    $region12: #{tpu_custom_call.1} parent=1 // pred_region
      %s46 = ssub.s32 512, 128
      %47 = vsyncadd [#allocation6], %s46
      %s48 = sshll.u32 [#allocation7], 4
      %s49 = int_to_ptr.vmem [resolvable:$true] %s48
      %54 = dma.hbm_to_vmem [thread:$0]  %s2, 128, %s49, [#allocation6], 128, 128, 8
    $region13: #{tpu_custom_call.1} parent=1 // pred_fallthru
      _
    // Predicated region
    $region14: #{tpu_custom_call.1} parent=1 // pred_check
      _
    $region15: #{tpu_custom_call.1} parent=1 // pred_check_branch
      %56 = sbr.rel (0) target = $region17
    $region16: #{tpu_custom_call.1} parent=1 // pred_region
      %s58 = ssub.s32 2048, 2048
      %59 = vsyncadd [#allocation9], %s58
      %s60 = sshll.u32 [#allocation8], 4
      %s61 = int_to_ptr.vmem [resolvable:$true] %s60
      %66 = dma.hbm_to_vmem [thread:$0]  %s3, 2048, %s61, [#allocation9], 128, 128, 8
    $region17: #{tpu_custom_call.1} parent=1 // pred_fallthru
      _
    // Predicated region
    $region18: #{tpu_custom_call.1} parent=1 // pred_check
      _
    $region19: #{tpu_custom_call.1} parent=1 // pred_check_branch
      %68 = sbr.rel (0) target = $region21
    $region20: #{tpu_custom_call.1} parent=1 // pred_region
      %s70 = ssub.s32 2048, 2048
      %71 = vsyncadd [#allocation9], %s70
      %s72 = sshll.u32 [#allocation10], 4
      %s73 = int_to_ptr.vmem [resolvable:$true] %s72
      %78 = dma.hbm_to_vmem [thread:$0]  %s4, 2048, %s73, [#allocation9], 128, 128, 8
    $region21: #{tpu_custom_call.1} parent=1 // pred_fallthru
      _
    // Predicated region
    $region22: #{tpu_custom_call.1} parent=1 // pred_check
      _
    $region23: #{tpu_custom_call.1} parent=1 // pred_check_branch
      %80 = sbr.rel (0) target = $region25
    $region24: #{tpu_custom_call.1} parent=1 // pred_region
      %s82 = ssub.s32 2048, 2048
      %83 = vsyncadd [#allocation12], %s82
      %s84 = sshll.u32 [#allocation11], 4
      %s85 = int_to_ptr.vmem [resolvable:$true] %s84
      %90 = dma.hbm_to_vmem [thread:$0]  %s5, 2048, %s85, [#allocation12], 128, 128, 8
    $region25: #{tpu_custom_call.1} parent=1 // pred_fallthru
      _
    // Predicated region
    $region26: #{tpu_custom_call.1} parent=1 // pred_check
      _
    $region27: #{tpu_custom_call.1} parent=1 // pred_check_branch
      %92 = sbr.rel (0) target = $region29
    $region28: #{tpu_custom_call.1} parent=1 // pred_region
      _
    $region29: #{tpu_custom_call.1} parent=1 // pred_fallthru
      _
    // Predicated region
    $region30: #{tpu_custom_call.1} parent=1 // pred_check
      _
    $region31: #{tpu_custom_call.1} parent=1 // pred_check_branch
      %94 = sbr.rel (0) target = $region33
    $region32: #{tpu_custom_call.1} parent=1 // pred_region
      %s96 = ssub.s32 2048, 2048
      %97 = vsyncadd [#allocation12], %s96
      %s98 = sshll.u32 [#allocation13], 4
      %s99 = int_to_ptr.vmem [resolvable:$true] %s98
      %104 = dma.hbm_to_vmem [thread:$0]  %s7, 2048, %s99, [#allocation12], 128, 128, 8
    $region33: #{tpu_custom_call.1} parent=1 // pred_fallthru
      _
    // Predicated region
    $region34: #{tpu_custom_call.1} parent=1 // pred_check
      _
    $region35: #{tpu_custom_call.1} parent=1 // pred_check_branch
      %106 = sbr.rel (0) target = $region37
    $region36: #{tpu_custom_call.1} parent=1 // pred_region
      _
    $region37: #{tpu_custom_call.1} parent=1 // pred_fallthru
      _
    // Predicated region
    $region38: #{tpu_custom_call.1} parent=1 // pred_check
      _
    $region39: #{tpu_custom_call.1} parent=1 // pred_check_branch
      %108 = sbr.rel (0) target = $region41
    $region40: #{tpu_custom_call.1} parent=1 // pred_region
      %109 = dma.done [#allocation3], 512
    $region41: #{tpu_custom_call.1} parent=1 // pred_fallthru
      _
    // Predicated region
    $region42: #{tpu_custom_call.1} parent=1 // pred_check
      _
    $region43: #{tpu_custom_call.1} parent=1 // pred_check_branch
      %111 = sbr.rel (0) target = $region45
    $region44: #{tpu_custom_call.1} parent=1 // pred_region
      %112 = dma.done [#allocation6], 512
    $region45: #{tpu_custom_call.1} parent=1 // pred_fallthru
      _
    // Predicated region
    $region46: #{tpu_custom_call.1} parent=1 // pred_check
      _
    $region47: #{tpu_custom_call.1} parent=1 // pred_check_branch
      %114 = sbr.rel (0) target = $region49
    $region48: #{tpu_custom_call.1} parent=1 // pred_region
      %115 = dma.done [#allocation6], 512
    $region49: #{tpu_custom_call.1} parent=1 // pred_fallthru
      _
    // Predicated region
    $region50: #{tpu_custom_call.1} parent=1 // pred_check
      _
    $region51: #{tpu_custom_call.1} parent=1 // pred_check_branch
      %117 = sbr.rel (0) target = $region53
    $region52: #{tpu_custom_call.1} parent=1 // pred_region
      %118 = dma.done [#allocation9], 2048
    $region53: #{tpu_custom_call.1} parent=1 // pred_fallthru
      _
    // Predicated region
    $region54: #{tpu_custom_call.1} parent=1 // pred_check
      _
    $region55: #{tpu_custom_call.1} parent=1 // pred_check_branch
      %120 = sbr.rel (0) target = $region57
    $region56: #{tpu_custom_call.1} parent=1 // pred_region
      %121 = dma.done [#allocation9], 2048
    $region57: #{tpu_custom_call.1} parent=1 // pred_fallthru
      _
    // Predicated region
    $region58: #{tpu_custom_call.1} parent=1 // pred_check
      _
    $region59: #{tpu_custom_call.1} parent=1 // pred_check_branch
      %123 = sbr.rel (0) target = $region61
    $region60: #{tpu_custom_call.1} parent=1 // pred_region
      %124 = dma.done [#allocation12], 2048
    $region61: #{tpu_custom_call.1} parent=1 // pred_fallthru
      _
    // Predicated region
    $region62: #{tpu_custom_call.1} parent=1 // pred_check
      _
    $region63: #{tpu_custom_call.1} parent=1 // pred_check_branch
      %126 = sbr.rel (0) target = $region65
    $region64: #{tpu_custom_call.1} parent=1 // pred_region
      %127 = dma.done [#allocation12], 2048
    $region65: #{tpu_custom_call.1} parent=1 // pred_fallthru
      _
    %v128 = vld [vmem:[#allocation2] sm:$0xff]
    %v129 = vld [vmem:[#allocation2 + $0x8] sm:$0xff]
    %v130 = vld [vmem:[#allocation2 + $0x10] sm:$0xff]
    %v131 = vld [vmem:[#allocation2 + $0x18] sm:$0xff]
    %v132 = vld [vmem:[#allocation8] sm:$0xff]
    %v133 = vld [vmem:[#allocation8 + $0x8] sm:$0xff]
    %v134 = vld [vmem:[#allocation8 + $0x10] sm:$0xff]
    %v135 = vld [vmem:[#allocation8 + $0x18] sm:$0xff]
    %v136 = vld [vmem:[#allocation8 + $0x20] sm:$0xff]
    %v137 = vld [vmem:[#allocation8 + $0x28] sm:$0xff]
    %v138 = vld [vmem:[#allocation8 + $0x30] sm:$0xff]
    %v139 = vld [vmem:[#allocation8 + $0x38] sm:$0xff]
    %v140 = vld [vmem:[#allocation8 + $0x40] sm:$0xff]
    %v141 = vld [vmem:[#allocation8 + $0x48] sm:$0xff]
    %v142 = vld [vmem:[#allocation8 + $0x50] sm:$0xff]
    %v143 = vld [vmem:[#allocation8 + $0x58] sm:$0xff]
    %v144 = vld [vmem:[#allocation8 + $0x60] sm:$0xff]
    %v145 = vld [vmem:[#allocation8 + $0x68] sm:$0xff]
    %v146 = vld [vmem:[#allocation8 + $0x70] sm:$0xff]
    %v147 = vld [vmem:[#allocation8 + $0x78] sm:$0xff]
    %v148 = vld [vmem:[#allocation5] sm:$0xff]
    %v149 = vld [vmem:[#allocation5 + $0x8] sm:$0xff]
    %v150 = vld [vmem:[#allocation5 + $0x10] sm:$0xff]
    %v151 = vld [vmem:[#allocation5 + $0x18] sm:$0xff]
    %v152 = vld [vmem:[#allocation10] sm:$0xff]
    %v153 = vld [vmem:[#allocation10 + $0x8] sm:$0xff]
    %v154 = vld [vmem:[#allocation10 + $0x10] sm:$0xff]
    %v155 = vld [vmem:[#allocation10 + $0x18] sm:$0xff]
    %v156 = vld [vmem:[#allocation10 + $0x20] sm:$0xff]
    %v157 = vld [vmem:[#allocation10 + $0x28] sm:$0xff]
    %v158 = vld [vmem:[#allocation10 + $0x30] sm:$0xff]
    %v159 = vld [vmem:[#allocation10 + $0x38] sm:$0xff]
    %v160 = vld [vmem:[#allocation10 + $0x40] sm:$0xff]
    %v161 = vld [vmem:[#allocation10 + $0x48] sm:$0xff]
    %v162 = vld [vmem:[#allocation10 + $0x50] sm:$0xff]
    %v163 = vld [vmem:[#allocation10 + $0x58] sm:$0xff]
    %v164 = vld [vmem:[#allocation10 + $0x60] sm:$0xff]
    %v165 = vld [vmem:[#allocation10 + $0x68] sm:$0xff]
    %v166 = vld [vmem:[#allocation10 + $0x70] sm:$0xff]
    %v167 = vld [vmem:[#allocation10 + $0x78] sm:$0xff]
    %168 = vmatprep.subr.mxu0 0.0
    %169 = vmatpush1.msra.mxu0 %v152
    %170 = vmatprep.subr.mxu0 0.0
    %171 = vmatpush1.msra.mxu0 %v153
    %172 = vmatprep.subr.mxu0 0.0
    %173 = vmatpush1.msra.mxu0 %v154
    %174 = vmatprep.subr.mxu0 0.0
    %175 = vmatpush1.msra.mxu0 %v155
    %176 = vmatprep.subr.mxu0 0.0
    %177 = vmatpush1.msra.mxu0 %v156
    %178 = vmatprep.subr.mxu0 0.0
    %179 = vmatpush1.msra.mxu0 %v157
    %180 = vmatprep.subr.mxu0 0.0
    %181 = vmatpush1.msra.mxu0 %v158
    %182 = vmatprep.subr.mxu0 0.0
    %183 = vmatpush1.msra.mxu0 %v159
    %184 = vmatprep.subr.mxu0 0.0
    %185 = vmatpush1.msra.mxu0 %v160
    %186 = vmatprep.subr.mxu0 0.0
    %187 = vmatpush1.msra.mxu0 %v161
    %188 = vmatprep.subr.mxu0 0.0
    %189 = vmatpush1.msra.mxu0 %v162
    %190 = vmatprep.subr.mxu0 0.0
    %191 = vmatpush1.msra.mxu0 %v163
    %192 = vmatprep.subr.mxu0 0.0
    %193 = vmatpush1.msra.mxu0 %v164
    %194 = vmatprep.subr.mxu0 0.0
    %195 = vmatpush1.msra.mxu0 %v165
    %196 = vmatprep.subr.mxu0 0.0
    %197 = vmatpush1.msra.mxu0 %v166
    %198 = vmatprep.subr.mxu0 0.0
    %199 = vmatpush1.msra.mxu0 %v167
    %200 = vmatprep.subr.mxu0 0.0
    %201 = vmatpush1.msra.mxu0 0.0
    %202 = vmatprep.subr.mxu0 0.0
    %203 = vmatpush1.msra.mxu0 0.0
    %204 = vmatprep.subr.mxu0 0.0
    %205 = vmatpush1.msra.mxu0 0.0
    %206 = vmatprep.subr.mxu0 0.0
    %207 = vmatpush1.msra.mxu0 0.0
    %208 = vmatprep.subr.mxu0 0.0
    %209 = vmatpush1.msra.mxu0 0.0
    %210 = vmatprep.subr.mxu0 0.0
    %211 = vmatpush1.msra.mxu0 0.0
    %212 = vmatprep.subr.mxu0 0.0
    %213 = vmatpush1.msra.mxu0 0.0
    %214 = vmatprep.subr.mxu0 0.0
    %215 = vmatpush1.msra.mxu0 0.0
    %216 = vmatprep.subr.mxu0 0.0
    %217 = vmatpush1.msra.mxu0 0.0
    %218 = vmatprep.subr.mxu0 0.0
    %219 = vmatpush1.msra.mxu0 0.0
    %220 = vmatprep.subr.mxu0 0.0
    %221 = vmatpush1.msra.mxu0 0.0
    %222 = vmatprep.subr.mxu0 0.0
    %223 = vmatpush1.msra.mxu0 0.0
    %224 = vmatprep.subr.mxu0 0.0
    %225 = vmatpush1.msra.mxu0 0.0
    %226 = vmatprep.subr.mxu0 0.0
    %227 = vmatpush1.msra.mxu0 0.0
    %228 = vmatprep.subr.mxu0 0.0
    %229 = vmatpush1.msra.mxu0 0.0
    %230 = vmatprep.subr.mxu0 0.0
    %231 = vmatpush1.msra.mxu0 0.0
    %232 = vmatprep.mubr.f32.mxu0 0.0
    %233 = vmatmul.mubr.f32.gmra.mrb[0].mxu0 %v148
    %v234 = vpop.f32.mrb[0].mxu0
    %v235 = vadd.f32 0.0, %v234
    %v236 = vpop.f32.mrb[0].mxu0
    %237 = vmatprep.mubr.f32.mxu0 0.0
    %238 = vmatmul.mubr.f32.gmra.mrb[0].mxu0 %v149
    %v239 = vpop.f32.mrb[0].mxu0
    %v240 = vadd.f32 0.0, %v239
    %v241 = vpop.f32.mrb[0].mxu0
    %242 = vmatprep.mubr.f32.mxu0 0.0
    %243 = vmatmul.mubr.f32.gmra.mrb[0].mxu0 %v150
    %v244 = vpop.f32.mrb[0].mxu0
    %v245 = vadd.f32 0.0, %v244
    %v246 = vpop.f32.mrb[0].mxu0
    %247 = vmatprep.mubr.f32.mxu0 0.0
    %248 = vmatmul.mubr.f32.gmra.mrb[0].mxu0 %v151
    %v249 = vpop.f32.mrb[0].mxu0
    %v250 = vadd.f32 0.0, %v249
    %v251 = vpop.f32.mrb[0].mxu0
    %252 = vdwg.mxu0
    %253 = vmatprep.subr.mxu0 0.0
    %254 = vmatpush1.msra.mxu0 %v132
    %255 = vmatprep.subr.mxu0 0.0
    %256 = vmatpush1.msra.mxu0 %v133
    %257 = vmatprep.subr.mxu0 0.0
    %258 = vmatpush1.msra.mxu0 %v134
    %259 = vmatprep.subr.mxu0 0.0
    %260 = vmatpush1.msra.mxu0 %v135
    %261 = vmatprep.subr.mxu0 0.0
    %262 = vmatpush1.msra.mxu0 %v136
    %263 = vmatprep.subr.mxu0 0.0
    %264 = vmatpush1.msra.mxu0 %v137
    %265 = vmatprep.subr.mxu0 0.0
    %266 = vmatpush1.msra.mxu0 %v138
    %267 = vmatprep.subr.mxu0 0.0
    %268 = vmatpush1.msra.mxu0 %v139
    %269 = vmatprep.subr.mxu0 0.0
    %270 = vmatpush1.msra.mxu0 %v140
    %271 = vmatprep.subr.mxu0 0.0
    %272 = vmatpush1.msra.mxu0 %v141
    %273 = vmatprep.subr.mxu0 0.0
    %274 = vmatpush1.msra.mxu0 %v142
    %275 = vmatprep.subr.mxu0 0.0
    %276 = vmatpush1.msra.mxu0 %v143
    %277 = vmatprep.subr.mxu0 0.0
    %278 = vmatpush1.msra.mxu0 %v144
    %279 = vmatprep.subr.mxu0 0.0
    %280 = vmatpush1.msra.mxu0 %v145
    %281 = vmatprep.subr.mxu0 0.0
    %282 = vmatpush1.msra.mxu0 %v146
    %283 = vmatprep.subr.mxu0 0.0
    %284 = vmatpush1.msra.mxu0 %v147
    %285 = vmatprep.subr.mxu0 0.0
    %286 = vmatpush1.msra.mxu0 0.0
    %287 = vmatprep.subr.mxu0 0.0
    %288 = vmatpush1.msra.mxu0 0.0
    %289 = vmatprep.subr.mxu0 0.0
    %290 = vmatpush1.msra.mxu0 0.0
    %291 = vmatprep.subr.mxu0 0.0
    %292 = vmatpush1.msra.mxu0 0.0
    %293 = vmatprep.subr.mxu0 0.0
    %294 = vmatpush1.msra.mxu0 0.0
    %295 = vmatprep.subr.mxu0 0.0
    %296 = vmatpush1.msra.mxu0 0.0
    %297 = vmatprep.subr.mxu0 0.0
    %298 = vmatpush1.msra.mxu0 0.0
    %299 = vmatprep.subr.mxu0 0.0
    %300 = vmatpush1.msra.mxu0 0.0
    %301 = vmatprep.subr.mxu0 0.0
    %302 = vmatpush1.msra.mxu0 0.0
    %303 = vmatprep.subr.mxu0 0.0
    %304 = vmatpush1.msra.mxu0 0.0
    %305 = vmatprep.subr.mxu0 0.0
    %306 = vmatpush1.msra.mxu0 0.0
    %307 = vmatprep.subr.mxu0 0.0
    %308 = vmatpush1.msra.mxu0 0.0
    %309 = vmatprep.subr.mxu0 0.0
    %310 = vmatpush1.msra.mxu0 0.0
    %311 = vmatprep.subr.mxu0 0.0
    %312 = vmatpush1.msra.mxu0 0.0
    %313 = vmatprep.subr.mxu0 0.0
    %314 = vmatpush1.msra.mxu0 0.0
    %315 = vmatprep.subr.mxu0 0.0
    %316 = vmatpush1.msra.mxu0 0.0
    %317 = vmatprep.mubr.f32.mxu0 0.0
    %318 = vmatmul.mubr.f32.gmra.mrb[0].mxu0 %v128
    %v319 = vpop.f32.mrb[0].mxu0
    %v320 = vadd.f32 %v235, %v319
    %v321 = vpop.f32.mrb[0].mxu0
    %322 = vmatprep.mubr.f32.mxu0 0.0
    %323 = vmatmul.mubr.f32.gmra.mrb[0].mxu0 %v129
    %v324 = vpop.f32.mrb[0].mxu0
    %v325 = vadd.f32 %v240, %v324
    %v326 = vpop.f32.mrb[0].mxu0
    %327 = vmatprep.mubr.f32.mxu0 0.0
    %328 = vmatmul.mubr.f32.gmra.mrb[0].mxu0 %v130
    %v329 = vpop.f32.mrb[0].mxu0
    %v330 = vadd.f32 %v245, %v329
    %v331 = vpop.f32.mrb[0].mxu0
    %332 = vmatprep.mubr.f32.mxu0 0.0
    %333 = vmatmul.mubr.f32.gmra.mrb[0].mxu0 %v131
    %v334 = vpop.f32.mrb[0].mxu0
    %v335 = vadd.f32 %v250, %v334
    %v336 = vpop.f32.mrb[0].mxu0
    %337 = vdwg.mxu0
    %v338 = vld [vmem:[#allocation7] sm:$0xff]
    %v339 = vld [vmem:[#allocation7 + $0x8] sm:$0xff]
    %v340 = vld [vmem:[#allocation7 + $0x10] sm:$0xff]
    %v341 = vld [vmem:[#allocation7 + $0x18] sm:$0xff]
    %v342 = vld [vmem:[#allocation11] sm:$0xff]
    %v343 = vld [vmem:[#allocation11 + $0x8] sm:$0xff]
    %v344 = vld [vmem:[#allocation11 + $0x10] sm:$0xff]
    %v345 = vld [vmem:[#allocation11 + $0x18] sm:$0xff]
    %v346 = vld [vmem:[#allocation11 + $0x20] sm:$0xff]
    %v347 = vld [vmem:[#allocation11 + $0x28] sm:$0xff]
    %v348 = vld [vmem:[#allocation11 + $0x30] sm:$0xff]
    %v349 = vld [vmem:[#allocation11 + $0x38] sm:$0xff]
    %v350 = vld [vmem:[#allocation11 + $0x40] sm:$0xff]
    %v351 = vld [vmem:[#allocation11 + $0x48] sm:$0xff]
    %v352 = vld [vmem:[#allocation11 + $0x50] sm:$0xff]
    %v353 = vld [vmem:[#allocation11 + $0x58] sm:$0xff]
    %v354 = vld [vmem:[#allocation11 + $0x60] sm:$0xff]
    %v355 = vld [vmem:[#allocation11 + $0x68] sm:$0xff]
    %v356 = vld [vmem:[#allocation11 + $0x70] sm:$0xff]
    %v357 = vld [vmem:[#allocation11 + $0x78] sm:$0xff]
    %358 = vmatprep.subr.mxu0 0.0
    %359 = vmatpush1.msra.mxu0 %v342
    %360 = vmatprep.subr.mxu0 0.0
    %361 = vmatpush1.msra.mxu0 %v343
    %362 = vmatprep.subr.mxu0 0.0
    %363 = vmatpush1.msra.mxu0 %v344
    %364 = vmatprep.subr.mxu0 0.0
    %365 = vmatpush1.msra.mxu0 %v345
    %366 = vmatprep.subr.mxu0 0.0
    %367 = vmatpush1.msra.mxu0 %v346
    %368 = vmatprep.subr.mxu0 0.0
    %369 = vmatpush1.msra.mxu0 %v347
    %370 = vmatprep.subr.mxu0 0.0
    %371 = vmatpush1.msra.mxu0 %v348
    %372 = vmatprep.subr.mxu0 0.0
    %373 = vmatpush1.msra.mxu0 %v349
    %374 = vmatprep.subr.mxu0 0.0
    %375 = vmatpush1.msra.mxu0 %v350
    %376 = vmatprep.subr.mxu0 0.0
    %377 = vmatpush1.msra.mxu0 %v351
    %378 = vmatprep.subr.mxu0 0.0
    %379 = vmatpush1.msra.mxu0 %v352
    %380 = vmatprep.subr.mxu0 0.0
    %381 = vmatpush1.msra.mxu0 %v353
    %382 = vmatprep.subr.mxu0 0.0
    %383 = vmatpush1.msra.mxu0 %v354
    %384 = vmatprep.subr.mxu0 0.0
    %385 = vmatpush1.msra.mxu0 %v355
    %386 = vmatprep.subr.mxu0 0.0
    %387 = vmatpush1.msra.mxu0 %v356
    %388 = vmatprep.subr.mxu0 0.0
    %389 = vmatpush1.msra.mxu0 %v357
    %390 = vmatprep.subr.mxu0 0.0
    %391 = vmatpush1.msra.mxu0 0.0
    %392 = vmatprep.subr.mxu0 0.0
    %393 = vmatpush1.msra.mxu0 0.0
    %394 = vmatprep.subr.mxu0 0.0
    %395 = vmatpush1.msra.mxu0 0.0
    %396 = vmatprep.subr.mxu0 0.0
    %397 = vmatpush1.msra.mxu0 0.0
    %398 = vmatprep.subr.mxu0 0.0
    %399 = vmatpush1.msra.mxu0 0.0
    %400 = vmatprep.subr.mxu0 0.0
    %401 = vmatpush1.msra.mxu0 0.0
    %402 = vmatprep.subr.mxu0 0.0
    %403 = vmatpush1.msra.mxu0 0.0
    %404 = vmatprep.subr.mxu0 0.0
    %405 = vmatpush1.msra.mxu0 0.0
    %406 = vmatprep.subr.mxu0 0.0
    %407 = vmatpush1.msra.mxu0 0.0
    %408 = vmatprep.subr.mxu0 0.0
    %409 = vmatpush1.msra.mxu0 0.0
    %410 = vmatprep.subr.mxu0 0.0
    %411 = vmatpush1.msra.mxu0 0.0
    %412 = vmatprep.subr.mxu0 0.0
    %413 = vmatpush1.msra.mxu0 0.0
    %414 = vmatprep.subr.mxu0 0.0
    %415 = vmatpush1.msra.mxu0 0.0
    %416 = vmatprep.subr.mxu0 0.0
    %417 = vmatpush1.msra.mxu0 0.0
    %418 = vmatprep.subr.mxu0 0.0
    %419 = vmatpush1.msra.mxu0 0.0
    %420 = vmatprep.subr.mxu0 0.0
    %421 = vmatpush1.msra.mxu0 0.0
    %422 = vmatprep.mubr.f32.mxu0 0.0
    %423 = vmatmul.mubr.f32.gmra.mrb[0].mxu0 %v338
    %v424 = vpop.f32.mrb[0].mxu0
    %v425 = vadd.f32 0.0, %v424
    %v426 = vpop.f32.mrb[0].mxu0
    %427 = vmatprep.mubr.f32.mxu0 0.0
    %428 = vmatmul.mubr.f32.gmra.mrb[0].mxu0 %v339
    %v429 = vpop.f32.mrb[0].mxu0
    %v430 = vadd.f32 0.0, %v429
    %v431 = vpop.f32.mrb[0].mxu0
    %432 = vmatprep.mubr.f32.mxu0 0.0
    %433 = vmatmul.mubr.f32.gmra.mrb[0].mxu0 %v340
    %v434 = vpop.f32.mrb[0].mxu0
    %v435 = vadd.f32 0.0, %v434
    %v436 = vpop.f32.mrb[0].mxu0
    %437 = vmatprep.mubr.f32.mxu0 0.0
    %438 = vmatmul.mubr.f32.gmra.mrb[0].mxu0 %v341
    %v439 = vpop.f32.mrb[0].mxu0
    %v440 = vadd.f32 0.0, %v439
    %v441 = vpop.f32.mrb[0].mxu0
    %442 = vdwg.mxu0
    %v443 = vadd.f32 %v320, %v425
    %v444 = vadd.f32 %v325, %v430
    %v445 = vadd.f32 %v330, %v435
    %v446 = vadd.f32 %v335, %v440
    %v447 = vld [vmem:[%s6] sm:$0x1]
    %v449 = vlaneseq
    %v450 = vshrl.u32 %v449, 7
    %v451 = vsub.s32 0, %v450
    %v452 = vrot.slane %v447, %v451
    %v454 = vadd.f32 %v443, %v452
    %v455 = vadd.f32 %v444, %v452
    %v456 = vadd.f32 %v445, %v452
    %v457 = vadd.f32 %v446, %v452
    %v458 = vmax.f32 %v454, 0.0
    %v459 = vmax.f32 %v455, 0.0
    %v460 = vmax.f32 %v456, 0.0
    %v461 = vmax.f32 %v457, 0.0
    %v462 = vld [vmem:[#allocation13] sm:$0xff]
    %v463 = vld [vmem:[#allocation13 + $0x8] sm:$0xff]
    %v464 = vld [vmem:[#allocation13 + $0x10] sm:$0xff]
    %v465 = vld [vmem:[#allocation13 + $0x18] sm:$0xff]
    %v466 = vld [vmem:[#allocation13 + $0x20] sm:$0xff]
    %v467 = vld [vmem:[#allocation13 + $0x28] sm:$0xff]
    %v468 = vld [vmem:[#allocation13 + $0x30] sm:$0xff]
    %v469 = vld [vmem:[#allocation13 + $0x38] sm:$0xff]
    %v470 = vld [vmem:[#allocation13 + $0x40] sm:$0xff]
    %v471 = vld [vmem:[#allocation13 + $0x48] sm:$0xff]
    %v472 = vld [vmem:[#allocation13 + $0x50] sm:$0xff]
    %v473 = vld [vmem:[#allocation13 + $0x58] sm:$0xff]
    %v474 = vld [vmem:[#allocation13 + $0x60] sm:$0xff]
    %v475 = vld [vmem:[#allocation13 + $0x68] sm:$0xff]
    %v476 = vld [vmem:[#allocation13 + $0x70] sm:$0xff]
    %v477 = vld [vmem:[#allocation13 + $0x78] sm:$0xff]
    %v478 = vld [vmem:[%s8] sm:$0x1]
    %v480 = vlaneseq
    %v481 = vshrl.u32 %v480, 7
    %v482 = vsub.s32 0, %v481
    %v483 = vrot.slane %v478, %v482
    %485 = vmatprep.subr.mxu0 0.0
    %486 = vmatpush1.msra.mxu0 %v462
    %487 = vmatprep.subr.mxu0 0.0
    %488 = vmatpush1.msra.mxu0 %v463
    %489 = vmatprep.subr.mxu0 0.0
    %490 = vmatpush1.msra.mxu0 %v464
    %491 = vmatprep.subr.mxu0 0.0
    %492 = vmatpush1.msra.mxu0 %v465
    %493 = vmatprep.subr.mxu0 0.0
    %494 = vmatpush1.msra.mxu0 %v466
    %495 = vmatprep.subr.mxu0 0.0
    %496 = vmatpush1.msra.mxu0 %v467
    %497 = vmatprep.subr.mxu0 0.0
    %498 = vmatpush1.msra.mxu0 %v468
    %499 = vmatprep.subr.mxu0 0.0
    %500 = vmatpush1.msra.mxu0 %v469
    %501 = vmatprep.subr.mxu0 0.0
    %502 = vmatpush1.msra.mxu0 %v470
    %503 = vmatprep.subr.mxu0 0.0
    %504 = vmatpush1.msra.mxu0 %v471
    %505 = vmatprep.subr.mxu0 0.0
    %506 = vmatpush1.msra.mxu0 %v472
    %507 = vmatprep.subr.mxu0 0.0
    %508 = vmatpush1.msra.mxu0 %v473
    %509 = vmatprep.subr.mxu0 0.0
    %510 = vmatpush1.msra.mxu0 %v474
    %511 = vmatprep.subr.mxu0 0.0
    %512 = vmatpush1.msra.mxu0 %v475
    %513 = vmatprep.subr.mxu0 0.0
    %514 = vmatpush1.msra.mxu0 %v476
    %515 = vmatprep.subr.mxu0 0.0
    %516 = vmatpush1.msra.mxu0 %v477
    %517 = vmatprep.subr.mxu0 0.0
    %518 = vmatpush1.msra.mxu0 0.0
    %519 = vmatprep.subr.mxu0 0.0
    %520 = vmatpush1.msra.mxu0 0.0
    %521 = vmatprep.subr.mxu0 0.0
    %522 = vmatpush1.msra.mxu0 0.0
    %523 = vmatprep.subr.mxu0 0.0
    %524 = vmatpush1.msra.mxu0 0.0
    %525 = vmatprep.subr.mxu0 0.0
    %526 = vmatpush1.msra.mxu0 0.0
    %527 = vmatprep.subr.mxu0 0.0
    %528 = vmatpush1.msra.mxu0 0.0
    %529 = vmatprep.subr.mxu0 0.0
    %530 = vmatpush1.msra.mxu0 0.0
    %531 = vmatprep.subr.mxu0 0.0
    %532 = vmatpush1.msra.mxu0 0.0
    %533 = vmatprep.subr.mxu0 0.0
    %534 = vmatpush1.msra.mxu0 0.0
    %535 = vmatprep.subr.mxu0 0.0
    %536 = vmatpush1.msra.mxu0 0.0
    %537 = vmatprep.subr.mxu0 0.0
    %538 = vmatpush1.msra.mxu0 0.0
    %539 = vmatprep.subr.mxu0 0.0
    %540 = vmatpush1.msra.mxu0 0.0
    %541 = vmatprep.subr.mxu0 0.0
    %542 = vmatpush1.msra.mxu0 0.0
    %543 = vmatprep.subr.mxu0 0.0
    %544 = vmatpush1.msra.mxu0 0.0
    %545 = vmatprep.subr.mxu0 0.0
    %546 = vmatpush1.msra.mxu0 0.0
    %547 = vmatprep.subr.mxu0 0.0
    %548 = vmatpush1.msra.mxu0 0.0
    %549 = vmatprep.mubr.f32.mxu0 0.0
    %550 = vmatmul.mubr.f32.gmra.mrb[0].mxu0 %v458
    %v551 = vpop.f32.mrb[0].mxu0
    %v552 = vadd.f32 %v483, %v551
    %v553 = vpop.f32.mrb[0].mxu0
    %554 = vmatprep.mubr.f32.mxu0 0.0
    %555 = vmatmul.mubr.f32.gmra.mrb[0].mxu0 %v459
    %v556 = vpop.f32.mrb[0].mxu0
    %v557 = vadd.f32 %v483, %v556
    %v558 = vpop.f32.mrb[0].mxu0
    %559 = vmatprep.mubr.f32.mxu0 0.0
    %560 = vmatmul.mubr.f32.gmra.mrb[0].mxu0 %v460
    %v561 = vpop.f32.mrb[0].mxu0
    %v562 = vadd.f32 %v483, %v561
    %v563 = vpop.f32.mrb[0].mxu0
    %564 = vmatprep.mubr.f32.mxu0 0.0
    %565 = vmatmul.mubr.f32.gmra.mrb[0].mxu0 %v461
    %v566 = vpop.f32.mrb[0].mxu0
    %v567 = vadd.f32 %v483, %v566
    %v568 = vpop.f32.mrb[0].mxu0
    %569 = vdwg.mxu0
    %570 = vmax.xlane.f32.xlu0 %v552
    %v571 = vpop.xlane.xlu0 %570
    %572 = vmax.xlane.f32.xlu0 %v557
    %v573 = vpop.xlane.xlu0 %572
    %574 = vmax.xlane.f32.xlu0 %v562
    %v575 = vpop.xlane.xlu0 %574
    %576 = vmax.xlane.f32.xlu0 %v567
    %v577 = vpop.xlane.xlu0 %576
    %v578 = vsub.f32 %v552, %v571
    %v579 = vsub.f32 %v557, %v573
    %v580 = vsub.f32 %v562, %v575
    %v581 = vsub.f32 %v567, %v577
    %v582 = vmul.f32 %v578, 1.442695
    %v583 = vpow.pop %v582
    %v584 = vmul.f32 %v579, 1.442695
    %v585 = vpow.pop %v584
    %v586 = vmul.f32 %v580, 1.442695
    %v587 = vpow.pop %v586
    %v588 = vmul.f32 %v581, 1.442695
    %v589 = vpow.pop %v588
    %590 = vadd.xlane.f32.xlu0 %v583
    %v591 = vpop.xlane.xlu0 %590
    %592 = vadd.xlane.f32.xlu0 %v585
    %v593 = vpop.xlane.xlu0 %592
    %594 = vadd.xlane.f32.xlu0 %v587
    %v595 = vpop.xlane.xlu0 %594
    %596 = vadd.xlane.f32.xlu0 %v589
    %v597 = vpop.xlane.xlu0 %596
    %v598 = vmul.f32 %v591, 0.1
    %v599 = vmul.f32 %v593, 0.1
    %v600 = vmul.f32 %v595, 0.1
    %v601 = vmul.f32 %v597, 0.1
    %vm602 = vcmp.ge.f32.partialorder %v583, %v598
    %vm603 = vcmp.ge.f32.partialorder %v585, %v599
    %vm604 = vcmp.ge.f32.partialorder %v587, %v600
    %vm605 = vcmp.ge.f32.partialorder %v589, %v601
    %v606 = vsel %vm602, 1.0, 0.0
    %v607 = vsel %vm603, 1.0, 0.0
    %v608 = vsel %vm604, 1.0, 0.0
    %v609 = vsel %vm605, 1.0, 0.0
    %v610 = vtrunc.f32 %v606
    %v611 = vtrunc.f32 %v607
    %v612 = vtrunc.f32 %v608
    %v613 = vtrunc.f32 %v609
    %v614 = vpack.c.f32.eXmY %v610, %v611, 312
    %v618 = vpack.c.f32.eXmY %v612, %v613, 312
    %v622 = vpack.c.b8 %v618, %v614
    %v624 = vunpack.c.0.s8 %v622
    %v625 = vunpack.c.1.s8 %v622
    %v626 = vunpack.c.2.s8 %v622
    %v627 = vunpack.c.3.s8 %v622
    %v628 = vpack.c.b16 %v624, %v624
    %v629 = vpack.c.b8 %v628, %v628
    %v630 = vpack.c.b16 %v625, %v625
    %v631 = vpack.c.b8 %v630, %v630
    %v632 = vpack.c.b16 %v626, %v626
    %v633 = vpack.c.b8 %v632, %v632
    %v634 = vpack.c.b16 %v627, %v627
    %v635 = vpack.c.b8 %v634, %v634
    %636 = vst [vmem:[#allocation14] sm:$0x3] %v629
    %637 = vst [vmem:[#allocation14 + $0x2] sm:$0x3] %v631
    %638 = vst [vmem:[#allocation14 + $0x4] sm:$0x3] %v633
    %639 = vst [vmem:[#allocation14 + $0x6] sm:$0x3] %v635
    // Predicated region
    $region66: #{tpu_custom_call.1} parent=1 // pred_check
      _
    $region67: #{tpu_custom_call.1} parent=1 // pred_check_branch
      %641 = sbr.rel (0) target = $region69
    $region68: #{tpu_custom_call.1} parent=1 // pred_region
      %s643 = ssub.s32 128, 32
      %644 = vsyncadd [#allocation4], %s643
      %s645 = sshll.u32 [#allocation14], 4
      %s646 = int_to_ptr.vmem [resolvable:$true] %s645
      %651 = dma.vmem_to_hbm [thread:$0]  %s646, 32, %s9, [#allocation4], 32, 32, 2
    $region69: #{tpu_custom_call.1} parent=1 // pred_fallthru
      _
    // Predicated region
    $region70: #{tpu_custom_call.1} parent=1 // pred_check
      _
    $region71: #{tpu_custom_call.1} parent=1 // pred_check_branch
      %653 = sbr.rel (0) target = $region73
    $region72: #{tpu_custom_call.1} parent=1 // pred_region
      %654 = dma.done [#allocation4], 128
    $region73: #{tpu_custom_call.1} parent=1 // pred_fallthru
      _
    %655 = vsyncpa [#allocation3], 1
    %656 = vsyncpa [#allocation6], 1
    %657 = vsyncpa [#allocation9], 1
    %658 = vsyncpa [#allocation12], 1
    %659 = vsyncpa [#allocation4], 1

</llo_original>
